<compile_context>
chip_gen: v5e
topology: v5e:2x2
jax: 0.10.0
libtpu: 0.0.40
codegen_flags: <defaults>
</compile_context>

<pallas_src>
import functools

import jax
import jax.numpy as jnp
from jax.experimental import pallas as pl
from jax.experimental.pallas import tpu as pltpu


def _freq_encode_kernel(x_ref, o_ref, *, freq_bands, recur_from_prev, include_input):
    """Frequency expansion on a lane-dense (tr, C) slab.

    x_ref: (tr, C) input slab (compute in f32).
    o_ref: (P, tr, C) part-major output block; every per-part store is a full
           (tr, C) lane-dense slab -> unmasked vst, no in-kernel concat.
    """
    x = x_ref[...].astype(jnp.float32)   # f32 compute (v5e VPU/EUP have no bf16)
    p = 0
    if include_input:
        o_ref[p] = x.astype(o_ref.dtype)
        p += 1
    s = c = None
    for k, freq in enumerate(freq_bands):          # static -> fully unrolled
        if recur_from_prev[k]:
            # f_k == 2 * f_{k-1}: double-angle recurrence (VPU only, no EUP).
            s, c = 2.0 * s * c, 1.0 - 2.0 * s * s
        else:
            xf = x * freq                          # exact eval / resync point
            s, c = jnp.sin(xf), jnp.cos(xf)
        o_ref[p] = s.astype(o_ref.dtype)
        o_ref[p + 1] = c.astype(o_ref.dtype)
        p += 2


def _freq_encode_jnp(x, freq_bands, include_input):
    """Reference / small-problem fallback (exact sin/cos, torch.cat order)."""
    parts = [x] if include_input else []
    for f in freq_bands:
        parts.append(jnp.sin(x * f))
        parts.append(jnp.cos(x * f))
    return jnp.concatenate(parts, axis=-1)


def _vmem_budget_and_limit():
    """Working-set budget & scoped-VMEM limit; conservative (v7x-safe) unless a
    128-MiB generation is detected."""
    budget, limit = 40 << 20, 48 << 20           # v7x: 64 MiB physical VMEM
    try:
        cap = pltpu.get_tpu_info().vmem_capacity_bytes
        if cap and cap >= (100 << 20):           # v5e / v6e: 128 MiB
            budget, limit = 56 << 20, 64 << 20
    except Exception:
        pass
    return budget, limit


def _pick_tiles(M, n_parts, in_itemsize, out_itemsize, row_tile, lane_tile, vmem_budget):
    """Pick (tr, C, grid, m_pad): largest lane-dense tile that fits the VMEM
    budget, preferring exact fits and an even grid >= 2 (v7x megacore)."""
    row_opts = [t for t in (1024, 512, 256, 128, 64, 32, 16) if t <= max(16, row_tile)]
    lane_opts = [c for c in (1024, 512, 256, 128) if c <= max(128, lane_tile)]
    cands = []
    for C in lane_opts:
        for tr in row_opts:
            chunk = tr * C
            grid = -(-M // chunk)
            padded = grid * chunk
            waste = (padded - M) / M
            # double-buffered input + part-major output tiles
            fits = 2 * chunk * (in_itemsize + n_parts * out_itemsize) <= vmem_budget
            cands.append((tr, C, grid, padded, waste, fits, chunk))
    ok = [c for c in cands if c[5] and c[4] <= 0.125]
    if ok:
        best = max(ok, key=lambda c: (c[3] == M, c[2] >= 2, c[2] % 2 == 0, c[6]))
    else:   # tiny problem forced through the kernel: just minimize padding
        best = min(cands, key=lambda c: (c[3], c[6]))
    return best[0], best[1], best[2], best[3]


class FreqEncoder:
    """JAX/Pallas port of lidarnerf FreqEncoder.

    layout="torch"         -> (N, output_dim); values and feature order match
                              torch.cat([x, sin(f0 x), cos(f0 x), ...], dim=-1).
    layout="feature_major" -> (output_dim, N); same feature order along dim 0,
                              produced with no transpose of the 13x-sized
                              output.  A consumer Linear with torch weight
                              W (H, output_dim) can use it unchanged:
                              W @ enc_fm == (enc_torch @ W.T).T
    """

    def __init__(self, input_dim, max_freq_log2, N_freqs, log_sampling=True,
                 include_input=True, n_periodic_fns=2,
                 use_recurrence=True, resync_every=3):
        assert n_periodic_fns == 2, "kernel hard-codes (sin, cos)"
        self.input_dim = input_dim
        self.include_input = include_input
        self.N_freqs = N_freqs
        self.n_periodic_fns = n_periodic_fns
        self.output_dim = (input_dim if include_input else 0) \
            + input_dim * N_freqs * n_periodic_fns

        if log_sampling:
            bands = 2.0 ** jnp.linspace(0.0, max_freq_log2, N_freqs)
        else:
            bands = jnp.linspace(2.0 ** 0.0, 2.0 ** max_freq_log2, N_freqs)
        # Static Python floats baked into the kernel (mirrors .numpy().tolist()).
        self.freq_bands = [float(b) for b in jax.device_get(bands)]

        # Per-band static flag: band k is derived from band k-1 by the
        # double-angle recurrence iff the ratio is exactly 2 and k is not a
        # resync point (error grows ~4x per recurred octave; resyncing every
        # few octaves keeps it ~1e-6..1e-5 in f32).
        recur = [False] * N_freqs
        if use_recurrence:
            for k in range(1, N_freqs):
                is_octave = abs(self.freq_bands[k] - 2.0 * self.freq_bands[k - 1]) \
                    <= 1e-4 * abs(self.freq_bands[k])
                recur[k] = is_octave and (k % max(1, resync_every) != 0)
        self.recur_from_prev = tuple(recur)

    def __call__(self, x, *, out_dtype=None, layout="torch",
                 row_tile=1024, lane_tile=512, min_kernel_elems=65536):
        assert layout in ("torch", "feature_major")
        orig_shape = x.shape
        D = orig_shape[-1]
        assert D == self.input_dim
        x2 = x.reshape(-1, D)
        N = x2.shape[0]
        out_dtype = jnp.dtype(x.dtype if out_dtype is None else out_dtype)
        P = (1 if self.include_input else 0) + self.N_freqs * self.n_periodic_fns

        # ---- small-problem fallback: skip the pallas launch entirely --------
        if N * D < min_kernel_elems:
            full = _freq_encode_jnp(x2, self.freq_bands, self.include_input).astype(out_dtype)
            if layout == "feature_major":
                return full.T
            return full.reshape(*orig_shape[:-1], self.output_dim)

        M = N * D
        in_itemsize = jnp.dtype(x.dtype).itemsize
        budget, vmem_limit = _vmem_budget_and_limit()
        tr, C, grid, m_pad = _pick_tiles(M, P, in_itemsize, out_dtype.itemsize,
                                         row_tile, lane_tile, budget)
        chunk = tr * C

        # ---- d-major flattening into lane-dense (R, C) slabs ----------------
        # x.T flattened keeps all samples of one input dim contiguous, so the
        # kernel's part-major output reshapes for free into a feature-major
        # (output_dim, N) array in torch.cat feature order (no moveaxis).
        if chunk % D == 0:
            n_per_chunk = chunk // D
            N_pad = pl.cdiv(N, n_per_chunk) * n_per_chunk
            xp = x2 if N_pad == N else jnp.pad(x2, ((0, N_pad - N), (0, 0)))
            x_flat = xp.T.reshape(-1)                      # (m_pad,)
        else:
            N_pad = None
            x_flat = jnp.pad(x2.T.reshape(-1), (0, m_pad - M))
        R = m_pad // C

        kernel = functools.partial(
            _freq_encode_kernel,
            freq_bands=tuple(self.freq_bands),
            recur_from_prev=self.recur_from_prev,
            include_input=self.include_input,
        )

        n_exact = sum(1 for r in self.recur_from_prev if not r)
        cost = pl.CostEstimate(
            flops=int(6 * P * m_pad),
            transcendentals=int(2 * n_exact * m_pad),
            bytes_accessed=int(m_pad * in_itemsize + P * m_pad * out_dtype.itemsize),
        )

        out = pl.pallas_call(
            kernel,
            out_shape=jax.ShapeDtypeStruct((P, R, C), out_dtype),
            grid=(grid,),
            in_specs=[pl.BlockSpec((tr, C), lambda i: (i, 0))],
            out_specs=pl.BlockSpec((P, tr, C), lambda i: (0, i, 0)),
            compiler_params=pltpu.CompilerParams(
                dimension_semantics=("parallel",),
                vmem_limit_bytes=vmem_limit,
            ),
            cost_estimate=cost,
        )(x_flat.reshape(R, C))                            # (P, R, C) part-major

        # ---- layout plumbing (no permutation of the 13x output) -------------
        if N_pad is not None:
            fm = out.reshape(self.output_dim, N_pad)       # free reshape
            if N_pad != N:
                fm = fm[:, :N]
        else:
            fm = out.reshape(P, m_pad)[:, :M].reshape(self.output_dim, N)

        if layout == "feature_major":
            return fm                                      # (output_dim, N)
        # torch layout: a single plain 2-D transpose (unavoidable to match the
        # sample-major torch memory order); latency-sensitive consumers should
        # take layout="feature_major" and skip it entirely.
        return fm.T.reshape(*orig_shape[:-1], self.output_dim)


if __name__ == "__main__":
    D = 4
    enc = FreqEncoder(input_dim=D, max_freq_log2=5, N_freqs=6,
                      log_sampling=True, include_input=True)            # recurrence on
    enc_exact = FreqEncoder(input_dim=D, max_freq_log2=5, N_freqs=6,
                            log_sampling=True, include_input=True,
                            use_recurrence=False)                        # exact sin/cos

    x_small = jax.random.normal(jax.random.PRNGKey(0), (128, D), dtype=jnp.float32)
    x = jax.random.normal(jax.random.PRNGKey(0), (32768, D), dtype=jnp.float32)
    ref_small = _freq_encode_jnp(x_small, enc.freq_bands, True)
    ref = _freq_encode_jnp(x, enc.freq_bands, True)

    # 1) tiny input -> jnp fallback path (no pallas launch)
    o = jax.block_until_ready(enc(x_small))
    assert o.shape == (128, enc.output_dim)
    assert jnp.allclose(o, ref_small, atol=1e-6, rtol=1e-6)

    # 2) same tiny input forced through the Pallas kernel (padding / 1-step grid)
    o = jax.block_until_ready(enc(x_small, min_kernel_elems=0))
    assert jnp.allclose(o, ref_small, atol=2e-4, rtol=1e-3)

    # 3) kernel path, exact sin/cos (tight tolerance)
    o = jax.block_until_ready(enc_exact(x))
    assert o.shape == (32768, enc.output_dim)
    assert jnp.allclose(o, ref, atol=1e-5, rtol=1e-5)

    # 4) kernel path, double-angle recurrence (default)
    o = jax.block_until_ready(enc(x))
    assert jnp.allclose(o, ref, atol=2e-4, rtol=1e-3)

    # 5) feature-major fast path: no HBM transpose of the 13x output; a torch
    #    Linear weight W (H, output_dim) consumes it directly as W @ enc.
    fm = jax.block_until_ready(enc(x, layout="feature_major"))
    assert fm.shape == (enc.output_dim, 32768)
    assert jnp.allclose(fm.T, ref, atol=2e-4, rtol=1e-3)
    W = jax.random.normal(jax.random.PRNGKey(1), (32, enc.output_dim), jnp.float32)
    h_ref = jnp.matmul(ref, W.T, precision=jax.lax.Precision.HIGHEST)
    h_fm = jnp.matmul(W, fm, precision=jax.lax.Precision.HIGHEST).T
    assert jnp.allclose(h_fm, h_ref, atol=5e-3, rtol=1e-3)

    # 6) bf16 output (halves the ~13x writeback traffic on mem-bound v5e)
    o = jax.block_until_ready(enc(x, out_dtype=jnp.bfloat16))
    assert o.dtype == jnp.bfloat16
    assert jnp.allclose(o.astype(jnp.float32), ref, atol=2e-2, rtol=2e-2)

    print("KERNEL_OK")
</pallas_src>

<mosaic_0001>
module attributes {stable_mosaic.version = 11 : i64} {
  func.func @_freq_encode_kernel(%arg0: i32, %arg1: memref<16x128xf32, #tpu.memory_space<vmem>>, %arg2: memref<13x16x128xf32, #tpu.memory_space<vmem>>) attributes {dimension_semantics = [#tpu.dimension_semantics<parallel>], iteration_bounds = array<i64: 1>, scalar_prefetch = 0 : i64, scratch_operands = 0 : i64, tpu.core_type = #tpu.core_type<tc>, window_params = [{transform_indices = @transform_0, window_bounds = array<i64: 16, 128>}, {transform_indices = @transform_1, window_bounds = array<i64: 13, 16, 128>}]} {
    %c0 = arith.constant 0 : index
    %c0_0 = arith.constant 0 : index
    %0 = vector.load %arg1[%c0, %c0_0] : memref<16x128xf32, #tpu.memory_space<vmem>>, vector<16x128xf32>
    %c0_1 = arith.constant 0 : index
    %c0_2 = arith.constant 0 : index
    %c0_3 = arith.constant 0 : index
    %1 = vector.load %arg2[%c0_1, %c0_2, %c0_3] : memref<13x16x128xf32, #tpu.memory_space<vmem>>, vector<1x16x128xf32>
    %2 = vector.shape_cast %1 : vector<1x16x128xf32> to vector<16x128xf32>
    %3 = vector.shape_cast %0 : vector<16x128xf32> to vector<1x16x128xf32>
    tpu.vector_store %arg2[%c0_1, %c0_2, %c0_3], %3 {strides = array<i32>} : memref<13x16x128xf32, #tpu.memory_space<vmem>>, vector<1x16x128xf32>,
    %cst = arith.constant 1.000000e+00 : f32
    %4 = vector.broadcast %cst : f32 to vector<16x128xf32>
    %5 = arith.mulf %0, %4 : vector<16x128xf32>
    %6 = math.sin %5 : vector<16x128xf32>
    %7 = math.cos %5 : vector<16x128xf32>
    %c1 = arith.constant 1 : index
    %c0_4 = arith.constant 0 : index
    %c0_5 = arith.constant 0 : index
    %8 = vector.load %arg2[%c1, %c0_4, %c0_5] : memref<13x16x128xf32, #tpu.memory_space<vmem>>, vector<1x16x128xf32>
    %9 = vector.shape_cast %8 : vector<1x16x128xf32> to vector<16x128xf32>
    %10 = vector.shape_cast %6 : vector<16x128xf32> to vector<1x16x128xf32>
    tpu.vector_store %arg2[%c1, %c0_4, %c0_5], %10 {strides = array<i32>} : memref<13x16x128xf32, #tpu.memory_space<vmem>>, vector<1x16x128xf32>,
    %c2 = arith.constant 2 : index
    %c0_6 = arith.constant 0 : index
    %c0_7 = arith.constant 0 : index
    %11 = vector.load %arg2[%c2, %c0_6, %c0_7] : memref<13x16x128xf32, #tpu.memory_space<vmem>>, vector<1x16x128xf32>
    %12 = vector.shape_cast %11 : vector<1x16x128xf32> to vector<16x128xf32>
    %13 = vector.shape_cast %7 : vector<16x128xf32> to vector<1x16x128xf32>
    tpu.vector_store %arg2[%c2, %c0_6, %c0_7], %13 {strides = array<i32>} : memref<13x16x128xf32, #tpu.memory_space<vmem>>, vector<1x16x128xf32>,
    %cst_8 = arith.constant 2.000000e+00 : f32
    %14 = vector.broadcast %cst_8 : f32 to vector<16x128xf32>
    %15 = arith.mulf %14, %6 : vector<16x128xf32>
    %16 = arith.mulf %15, %7 : vector<16x128xf32>
    %cst_9 = arith.constant 2.000000e+00 : f32
    %17 = vector.broadcast %cst_9 : f32 to vector<16x128xf32>
    %18 = arith.mulf %17, %6 : vector<16x128xf32>
    %19 = arith.mulf %18, %6 : vector<16x128xf32>
    %cst_10 = arith.constant 1.000000e+00 : f32
    %20 = vector.broadcast %cst_10 : f32 to vector<16x128xf32>
    %21 = arith.subf %20, %19 : vector<16x128xf32>
    %c3 = arith.constant 3 : index
    %c0_11 = arith.constant 0 : index
    %c0_12 = arith.constant 0 : index
    %22 = vector.load %arg2[%c3, %c0_11, %c0_12] : memref<13x16x128xf32, #tpu.memory_space<vmem>>, vector<1x16x128xf32>
    %23 = vector.shape_cast %22 : vector<1x16x128xf32> to vector<16x128xf32>
    %24 = vector.shape_cast %16 : vector<16x128xf32> to vector<1x16x128xf32>
    tpu.vector_store %arg2[%c3, %c0_11, %c0_12], %24 {strides = array<i32>} : memref<13x16x128xf32, #tpu.memory_space<vmem>>, vector<1x16x128xf32>,
    %c4 = arith.constant 4 : index
    %c0_13 = arith.constant 0 : index
    %c0_14 = arith.constant 0 : index
    %25 = vector.load %arg2[%c4, %c0_13, %c0_14] : memref<13x16x128xf32, #tpu.memory_space<vmem>>, vector<1x16x128xf32>
    %26 = vector.shape_cast %25 : vector<1x16x128xf32> to vector<16x128xf32>
    %27 = vector.shape_cast %21 : vector<16x128xf32> to vector<1x16x128xf32>
    tpu.vector_store %arg2[%c4, %c0_13, %c0_14], %27 {strides = array<i32>} : memref<13x16x128xf32, #tpu.memory_space<vmem>>, vector<1x16x128xf32>,
    %cst_15 = arith.constant 2.000000e+00 : f32
    %28 = vector.broadcast %cst_15 : f32 to vector<16x128xf32>
    %29 = arith.mulf %28, %16 : vector<16x128xf32>
    %30 = arith.mulf %29, %21 : vector<16x128xf32>
    %cst_16 = arith.constant 2.000000e+00 : f32
    %31 = vector.broadcast %cst_16 : f32 to vector<16x128xf32>
    %32 = arith.mulf %31, %16 : vector<16x128xf32>
    %33 = arith.mulf %32, %16 : vector<16x128xf32>
    %cst_17 = arith.constant 1.000000e+00 : f32
    %34 = vector.broadcast %cst_17 : f32 to vector<16x128xf32>
    %35 = arith.subf %34, %33 : vector<16x128xf32>
    %c5 = arith.constant 5 : index
    %c0_18 = arith.constant 0 : index
    %c0_19 = arith.constant 0 : index
    %36 = vector.load %arg2[%c5, %c0_18, %c0_19] : memref<13x16x128xf32, #tpu.memory_space<vmem>>, vector<1x16x128xf32>
    %37 = vector.shape_cast %36 : vector<1x16x128xf32> to vector<16x128xf32>
    %38 = vector.shape_cast %30 : vector<16x128xf32> to vector<1x16x128xf32>
    tpu.vector_store %arg2[%c5, %c0_18, %c0_19], %38 {strides = array<i32>} : memref<13x16x128xf32, #tpu.memory_space<vmem>>, vector<1x16x128xf32>,
    %c6 = arith.constant 6 : index
    %c0_20 = arith.constant 0 : index
    %c0_21 = arith.constant 0 : index
    %39 = vector.load %arg2[%c6, %c0_20, %c0_21] : memref<13x16x128xf32, #tpu.memory_space<vmem>>, vector<1x16x128xf32>
    %40 = vector.shape_cast %39 : vector<1x16x128xf32> to vector<16x128xf32>
    %41 = vector.shape_cast %35 : vector<16x128xf32> to vector<1x16x128xf32>
    tpu.vector_store %arg2[%c6, %c0_20, %c0_21], %41 {strides = array<i32>} : memref<13x16x128xf32, #tpu.memory_space<vmem>>, vector<1x16x128xf32>,
    %cst_22 = arith.constant 8.000000e+00 : f32
    %42 = vector.broadcast %cst_22 : f32 to vector<16x128xf32>
    %43 = arith.mulf %0, %42 : vector<16x128xf32>
    %44 = math.sin %43 : vector<16x128xf32>
    %45 = math.cos %43 : vector<16x128xf32>
    %c7 = arith.constant 7 : index
    %c0_23 = arith.constant 0 : index
    %c0_24 = arith.constant 0 : index
    %46 = vector.load %arg2[%c7, %c0_23, %c0_24] : memref<13x16x128xf32, #tpu.memory_space<vmem>>, vector<1x16x128xf32>
    %47 = vector.shape_cast %46 : vector<1x16x128xf32> to vector<16x128xf32>
    %48 = vector.shape_cast %44 : vector<16x128xf32> to vector<1x16x128xf32>
    tpu.vector_store %arg2[%c7, %c0_23, %c0_24], %48 {strides = array<i32>} : memref<13x16x128xf32, #tpu.memory_space<vmem>>, vector<1x16x128xf32>,
    %c8 = arith.constant 8 : index
    %c0_25 = arith.constant 0 : index
    %c0_26 = arith.constant 0 : index
    %49 = vector.load %arg2[%c8, %c0_25, %c0_26] : memref<13x16x128xf32, #tpu.memory_space<vmem>>, vector<1x16x128xf32>
    %50 = vector.shape_cast %49 : vector<1x16x128xf32> to vector<16x128xf32>
    %51 = vector.shape_cast %45 : vector<16x128xf32> to vector<1x16x128xf32>
    tpu.vector_store %arg2[%c8, %c0_25, %c0_26], %51 {strides = array<i32>} : memref<13x16x128xf32, #tpu.memory_space<vmem>>, vector<1x16x128xf32>,
    %cst_27 = arith.constant 2.000000e+00 : f32
    %52 = vector.broadcast %cst_27 : f32 to vector<16x128xf32>
    %53 = arith.mulf %52, %44 : vector<16x128xf32>
    %54 = arith.mulf %53, %45 : vector<16x128xf32>
    %cst_28 = arith.constant 2.000000e+00 : f32
    %55 = vector.broadcast %cst_28 : f32 to vector<16x128xf32>
    %56 = arith.mulf %55, %44 : vector<16x128xf32>
    %57 = arith.mulf %56, %44 : vector<16x128xf32>
    %cst_29 = arith.constant 1.000000e+00 : f32
    %58 = vector.broadcast %cst_29 : f32 to vector<16x128xf32>
    %59 = arith.subf %58, %57 : vector<16x128xf32>
    %c9 = arith.constant 9 : index
    %c0_30 = arith.constant 0 : index
    %c0_31 = arith.constant 0 : index
    %60 = vector.load %arg2[%c9, %c0_30, %c0_31] : memref<13x16x128xf32, #tpu.memory_space<vmem>>, vector<1x16x128xf32>
    %61 = vector.shape_cast %60 : vector<1x16x128xf32> to vector<16x128xf32>
    %62 = vector.shape_cast %54 : vector<16x128xf32> to vector<1x16x128xf32>
    tpu.vector_store %arg2[%c9, %c0_30, %c0_31], %62 {strides = array<i32>} : memref<13x16x128xf32, #tpu.memory_space<vmem>>, vector<1x16x128xf32>,
    %c10 = arith.constant 10 : index
    %c0_32 = arith.constant 0 : index
    %c0_33 = arith.constant 0 : index
    %63 = vector.load %arg2[%c10, %c0_32, %c0_33] : memref<13x16x128xf32, #tpu.memory_space<vmem>>, vector<1x16x128xf32>
    %64 = vector.shape_cast %63 : vector<1x16x128xf32> to vector<16x128xf32>
    %65 = vector.shape_cast %59 : vector<16x128xf32> to vector<1x16x128xf32>
    tpu.vector_store %arg2[%c10, %c0_32, %c0_33], %65 {strides = array<i32>} : memref<13x16x128xf32, #tpu.memory_space<vmem>>, vector<1x16x128xf32>,
    %cst_34 = arith.constant 2.000000e+00 : f32
    %66 = vector.broadcast %cst_34 : f32 to vector<16x128xf32>
    %67 = arith.mulf %66, %54 : vector<16x128xf32>
    %68 = arith.mulf %67, %59 : vector<16x128xf32>
    %cst_35 = arith.constant 2.000000e+00 : f32
    %69 = vector.broadcast %cst_35 : f32 to vector<16x128xf32>
    %70 = arith.mulf %69, %54 : vector<16x128xf32>
    %71 = arith.mulf %70, %54 : vector<16x128xf32>
    %cst_36 = arith.constant 1.000000e+00 : f32
    %72 = vector.broadcast %cst_36 : f32 to vector<16x128xf32>
    %73 = arith.subf %72, %71 : vector<16x128xf32>
    %c11 = arith.constant 11 : index
    %c0_37 = arith.constant 0 : index
    %c0_38 = arith.constant 0 : index
    %74 = vector.load %arg2[%c11, %c0_37, %c0_38] : memref<13x16x128xf32, #tpu.memory_space<vmem>>, vector<1x16x128xf32>
    %75 = vector.shape_cast %74 : vector<1x16x128xf32> to vector<16x128xf32>
    %76 = vector.shape_cast %68 : vector<16x128xf32> to vector<1x16x128xf32>
    tpu.vector_store %arg2[%c11, %c0_37, %c0_38], %76 {strides = array<i32>} : memref<13x16x128xf32, #tpu.memory_space<vmem>>, vector<1x16x128xf32>,
    %c12 = arith.constant 12 : index
    %c0_39 = arith.constant 0 : index
    %c0_40 = arith.constant 0 : index
    %77 = vector.load %arg2[%c12, %c0_39, %c0_40] : memref<13x16x128xf32, #tpu.memory_space<vmem>>, vector<1x16x128xf32>
    %78 = vector.shape_cast %77 : vector<1x16x128xf32> to vector<16x128xf32>
    %79 = vector.shape_cast %73 : vector<16x128xf32> to vector<1x16x128xf32>
    tpu.vector_store %arg2[%c12, %c0_39, %c0_40], %79 {strides = array<i32>} : memref<13x16x128xf32, #tpu.memory_space<vmem>>, vector<1x16x128xf32>,
    return
  }
  func.func @transform_0(%arg0: i32) -> (i32, i32) {
    %c0_i32 = arith.constant 0 : i32
    %c0_i32_0 = arith.constant 0 : i32
    return %arg0, %c0_i32 : i32, i32
  }
  func.func @transform_1(%arg0: i32) -> (i32, i32, i32) {
    %c0_i32 = arith.constant 0 : i32
    %c0_i32_0 = arith.constant 0 : i32
    %c0_i32_1 = arith.constant 0 : i32
    return %c0_i32, %arg0, %c0_i32_0 : i32, i32, i32
  }
}

</mosaic_0001>

<llo_original>
// kernel: tpu_custom_call.1
$region0: #{tpu_custom_call.1}
  #allocation0 [shape = 'u32[]', space=smem, size = 0x4, offset = 0x4, fixed_abs, tag = 'smem constant byte address 0x4 - core index']
  #allocation1 [shape = 'u32[72,128]{1,0:T(1,128)}', space=vmem, size = 0x9000, scoped, tag = 'internal scratch']
  %s0 = inlined_call_operand.hbm [shape: f32[16,128], index: 0, kind: input, shape index: {}]
  %s1 = inlined_call_operand.hbm [shape: f32[13,16,128], index: 1, kind: output, shape index: {}]
  %s2 = sld [smem:[#allocation0]]
  $region18: #{tpu_custom_call.1} parent=0
    _
  %s4 = ssub.s32 1, %s2
  %s5 = scalar_select 0, %s4, %s2
  $region1: #{tpu_custom_call.1} parent=0
    #allocation2 [shape = 'u8[8192]{0}', space=vmem, size = 0x2000, scoped, tag = 'input window, operand 0, single buffered']
    #allocation3 [shape = 's32[1]{0}', space=sflag, size = 0x4, scoped, tag = 'scoped memory for tpu_custom_call.1']
    #allocation4 [shape = 's32[1]{0}', space=sflag, size = 0x4, scoped, tag = 'scoped memory for tpu_custom_call.1']
    #allocation5 [shape = 'u8[106496]{0}', space=vmem, size = 0x1a000, scoped, tag = 'output window, operand 0, single buffered']
    %6 = vsyncpa [#allocation3], 0
    %7 = vsyncpa [#allocation4], 0
    // Predicated region
    $region2: #{tpu_custom_call.1} parent=1 // pred_check
      _
    $region3: #{tpu_custom_call.1} parent=1 // pred_check_branch
      %9 = sbr.rel (0) target = $region5
    $region4: #{tpu_custom_call.1} parent=1 // pred_region
      %11 = vsyncadd [#allocation3], 0
      %s12 = sshll.u32 %s0, 4
      %s13 = int_to_ptr.hbm [resolvable:$true] %s12
      %s14 = sshll.u32 [#allocation2], 4
      %s15 = int_to_ptr.vmem [resolvable:$true] %s14
      %20 = dma.hbm_to_vmem [thread:$0]  %s13, 256, %s15, [#allocation3], 128, 128, 8
    $region5: #{tpu_custom_call.1} parent=1 // pred_fallthru
      _
    // Predicated region
    $region6: #{tpu_custom_call.1} parent=1 // pred_check
      _
    $region7: #{tpu_custom_call.1} parent=1 // pred_check_branch
      %22 = sbr.rel (0) target = $region9
    $region8: #{tpu_custom_call.1} parent=1 // pred_region
      %24 = dma.done [#allocation3], 256
    $region9: #{tpu_custom_call.1} parent=1 // pred_fallthru
      _
    %v25 = vld [vmem:[#allocation2] sm:$0xff]
    %v26 = vld [vmem:[#allocation2 + $0x8] sm:$0xff]
    %27 = vst [vmem:[#allocation5] sm:$0xff] %v25
    %28 = vst [vmem:[#allocation5 + $0x8] sm:$0xff] %v26
    %v29 = vand.u32 2147483647, %v25
    %vm30 = vcmp.le.f32.partialorder %v29, 0.7853982
    %vm31 = vcmp.lt.s32.totalorder %v25, 0
    %v32 = vand.u32 %v25, 2139095040
    %v33 = vshrl.u32 %v32, 23
    %v34 = vsub.s32 %v33, 127
    %v35 = vand.u32 2147483647, %v25
    %v36 = vand.u32 %v35, 8388607
    %v37 = vor.u32 %v36, 8388608
    %v38 = vsub.s32 0, %v37
    %v39 = vadd.s32 %v34, 1
    %vm40 = vcmp.gt.s32.totalorder %v39, 0
    %v41 = vsel %vm40, %v39, 0
    %v42 = vshrl.u32 %v41, 5
    %v43 = vand.u32 %v41, 31
    %v44 = vsub.s32 32, %v43
    %v45 = vshrl.u32 683565275, %v44
    %v46 = vshll.u32 683565275, %v43
    %v47 = vshrl.u32 2475754826, %v44
    %v48 = vor.u32 %v46, %v47
    %v49 = vshll.u32 2475754826, %v43
    %v50 = vshrl.u32 2131351028, %v44
    %v51 = vor.u32 %v49, %v50
    %v52 = vshll.u32 2131351028, %v43
    %v53 = vshrl.u32 2102212464, %v44
    %v54 = vor.u32 %v52, %v53
    %v55 = vshll.u32 2102212464, %v43
    %v56 = vshrl.u32 920167782, %v44
    %v57 = vor.u32 %v55, %v56
    %v58 = vshll.u32 920167782, %v43
    %v59 = vshrl.u32 1326507024, %v44
    %v60 = vor.u32 %v58, %v59
    %vm61 = vcmp.lt.s32.totalorder %v42, 1
    %vm62 = vcmp.lt.s32.totalorder %v42, 2
    %vm63 = vcmp.lt.s32.totalorder %v42, 3
    %vm64 = vcmp.lt.s32.totalorder %v42, 4
    %v65 = vsel %vm61, %v45, %v48
    %v66 = vsel %vm64, %v54, 2102212464
    %v67 = vsel %vm63, %v51, %v66
    %v68 = vsel %vm62, %v65, %v67
    %v69 = vsel %vm61, %v48, %v51
    %v70 = vsel %vm64, %v57, 920167782
    %v71 = vsel %vm63, %v54, %v70
    %v72 = vsel %vm62, %v69, %v71
    %v73 = vsel %vm61, %v51, %v54
    %v74 = vsel %vm64, %v60, 1326507024
    %v75 = vsel %vm63, %v57, %v74
    %v76 = vsel %vm62, %v73, %v75
    %v77 = vshll.u32 %v37, 8
    %v78 = vand.u32 %v77, 65535
    %v79 = vshrl.u32 %v77, 16
    %v80 = vand.u32 %v76, 65535
    %v81 = vshrl.u32 %v76, 16
    %v82 = vmul.u32 %v78, %v80
    %v83 = vmul.u32 %v78, %v81
    %v84 = vmul.u32 %v79, %v80
    %v85 = vmul.u32 %v79, %v81
    %v86 = vshll.u32 %v83, 16
    %v87 = vshrl.u32 %v83, 16
    %v88 = vshll.u32 %v84, 16
    %v89 = vshrl.u32 %v84, 16
    %vm90 = vc.u32 %v82, %v86
    %v91 = vsel %vm90, 1, 0
    %v92 = vadd.s32 %v82, %v86
    %v93 = vadd.s32 %v85, %v91
    %vm94 = vc.u32 %v92, %v88
    %v95 = vsel %vm94, 1, 0
    %v96 = vadd.s32 %v92, %v88
    %v97 = vadd.s32 %v93, %v95
    %v98 = vadd.s32 %v97, %v87
    %v99 = vadd.s32 %v98, %v89
    %v100 = vand.u32 %v77, 65535
    %v101 = vshrl.u32 %v77, 16
    %v102 = vand.u32 %v72, 65535
    %v103 = vshrl.u32 %v72, 16
    %v104 = vmul.u32 %v100, %v102
    %v105 = vmul.u32 %v100, %v103
    %v106 = vmul.u32 %v101, %v102
    %v107 = vmul.u32 %v101, %v103
    %v108 = vshll.u32 %v105, 16
    %v109 = vshrl.u32 %v105, 16
    %v110 = vshll.u32 %v106, 16
    %v111 = vshrl.u32 %v106, 16
    %vm112 = vc.u32 %v104, %v108
    %v113 = vsel %vm112, 1, 0
    %v114 = vadd.s32 %v104, %v108
    %v115 = vadd.s32 %v107, %v113
    %vm116 = vc.u32 %v114, %v110
    %v117 = vsel %vm116, 1, 0
    %v118 = vadd.s32 %v114, %v110
    %v119 = vadd.s32 %v115, %v117
    %v120 = vadd.s32 %v119, %v109
    %v121 = vadd.s32 %v120, %v111
    %v122 = vmul.u32 %v77, %v68
    %v123 = vadd.s32 %v99, %v118
    %vm124 = vc.u32 %v99, %v118
    %v125 = vadd.s32 %v121, 1
    %v126 = vsel %vm124, %v125, %v121
    %v127 = vadd.s32 %v122, %v126
    %v128 = vadd.s32 %v127, 536870912
    %v129 = vshrl.u32 %v128, 30
    %v130 = vshll.u32 %v129, 30
    %v131 = vsub.s32 %v127, %v130
    %vm132 = vcmp.lt.s32.totalorder %v131, 0
    %v133 = vsub.s32 0, %v131
    %v134 = vsel %vm132, %v133, %v131
    %v135 = vclz %v134
    %v136 = vsub.s32 %v135, 2
    %vm137 = vcmp.gt.s32.totalorder 0, %v136
    %v138 = vsel %vm137, 0, %v136
    %v139 = vsub.s32 32, %v138
    %v140 = vshll.u32 %v131, %v138
    %v141 = vshrl.u32 %v123, %v139
    %v142 = vor.u32 %v140, %v141
    %v143 = vsub.s32 4294967266, %v138
    %v144 = vadd.s32 %v143, 127
    %v145 = vshll.u32 %v144, 23
    %v146 = vor.u32 4788187, %v145
    %v147 = vand.u32 2147483647, %v146
    %v149 = vcvt.s32.f32 %v142
    %v150 = vmul.f32 %v149, %v147
    %v151 = vxor.u32 %v150, 2147483648
    %v152 = vsel %vm31, %v151, %v150
    %v153 = vsub.s32 4, %v129
    %v154 = vsel %vm31, %v153, %v129
    %v155 = vsel %vm30, %v25, %v152
    %v156 = vsel %vm30, 0, %v154
    %v157 = vmul.f32 %v155, %v155
    %v158 = vmul.f32 %v157, -0.001358992
    %v159 = vadd.f32 %v158, 0.041655596
    %v160 = vmul.f32 %v157, %v159
    %v161 = vadd.f32 %v160, -0.4999988
    %v162 = vmul.f32 %v157, %v161
    %v163 = vadd.f32 1.0, %v162
    %v164 = vmul.f32 %v155, %v155
    %v165 = vmul.f32 %v164, -0.00019511016
    %v166 = vadd.f32 %v165, 0.008332121
    %v167 = vmul.f32 %v164, %v166
    %v168 = vadd.f32 %v167, -0.16666654
    %v169 = vmul.f32 %v164, %v168
    %v170 = vadd.f32 %v169, 1.0
    %v171 = vmul.f32 %v170, %v155
    %vm172 = vweird.f32 %v25
    %v173 = vadd.s32 %v156, 3
    %v174 = vand.u32 %v173, 3
    %vm175 = vcmp.lt.s32.totalorder %v174, 2
    %vm176 = vcmp.eq.s32.totalorder %v174, 0
    %v177 = vxor.u32 %v171, 2147483648
    %v178 = vsel %vm176, %v163, %v177
    %vm179 = vcmp.eq.s32.totalorder %v174, 2
    %v180 = vxor.u32 %v163, 2147483648
    %v181 = vsel %vm179, %v180, %v171
    %v182 = vsel %vm175, %v178, %v181
    %v183 = vsel %vm172, nan, %v182
    %v184 = vand.u32 2147483647, %v26
    %vm185 = vcmp.le.f32.partialorder %v184, 0.7853982
    %vm186 = vcmp.lt.s32.totalorder %v26, 0
    %v187 = vand.u32 %v26, 2139095040
    %v188 = vshrl.u32 %v187, 23
    %v189 = vsub.s32 %v188, 127
    %v190 = vand.u32 2147483647, %v26
    %v191 = vand.u32 %v190, 8388607
    %v192 = vor.u32 %v191, 8388608
    %v193 = vsub.s32 0, %v192
    %v194 = vadd.s32 %v189, 1
    %vm195 = vcmp.gt.s32.totalorder %v194, 0
    %v196 = vsel %vm195, %v194, 0
    %v197 = vshrl.u32 %v196, 5
    %v198 = vand.u32 %v196, 31
    %v199 = vsub.s32 32, %v198
    %v200 = vshrl.u32 683565275, %v199
    %v201 = vshll.u32 683565275, %v198
    %v202 = vshrl.u32 2475754826, %v199
    %v203 = vor.u32 %v201, %v202
    %v204 = vshll.u32 2475754826, %v198
    %v205 = vshrl.u32 2131351028, %v199
    %v206 = vor.u32 %v204, %v205
    %v207 = vshll.u32 2131351028, %v198
    %v208 = vshrl.u32 2102212464, %v199
    %v209 = vor.u32 %v207, %v208
    %v210 = vshll.u32 2102212464, %v198
    %v211 = vshrl.u32 920167782, %v199
    %v212 = vor.u32 %v210, %v211
    %v213 = vshll.u32 920167782, %v198
    %v214 = vshrl.u32 1326507024, %v199
    %v215 = vor.u32 %v213, %v214
    %vm216 = vcmp.lt.s32.totalorder %v197, 1
    %vm217 = vcmp.lt.s32.totalorder %v197, 2
    %vm218 = vcmp.lt.s32.totalorder %v197, 3
    %vm219 = vcmp.lt.s32.totalorder %v197, 4
    %v220 = vsel %vm216, %v200, %v203
    %v221 = vsel %vm219, %v209, 2102212464
    %v222 = vsel %vm218, %v206, %v221
    %v223 = vsel %vm217, %v220, %v222
    %v224 = vsel %vm216, %v203, %v206
    %v225 = vsel %vm219, %v212, 920167782
    %v226 = vsel %vm218, %v209, %v225
    %v227 = vsel %vm217, %v224, %v226
    %v228 = vsel %vm216, %v206, %v209
    %v229 = vsel %vm219, %v215, 1326507024
    %v230 = vsel %vm218, %v212, %v229
    %v231 = vsel %vm217, %v228, %v230
    %v232 = vshll.u32 %v192, 8
    %v233 = vand.u32 %v232, 65535
    %v234 = vshrl.u32 %v232, 16
    %v235 = vand.u32 %v231, 65535
    %v236 = vshrl.u32 %v231, 16
    %v237 = vmul.u32 %v233, %v235
    %v238 = vmul.u32 %v233, %v236
    %v239 = vmul.u32 %v234, %v235
    %v240 = vmul.u32 %v234, %v236
    %v241 = vshll.u32 %v238, 16
    %v242 = vshrl.u32 %v238, 16
    %v243 = vshll.u32 %v239, 16
    %v244 = vshrl.u32 %v239, 16
    %vm245 = vc.u32 %v237, %v241
    %v246 = vsel %vm245, 1, 0
    %v247 = vadd.s32 %v237, %v241
    %v248 = vadd.s32 %v240, %v246
    %vm249 = vc.u32 %v247, %v243
    %v250 = vsel %vm249, 1, 0
    %v251 = vadd.s32 %v247, %v243
    %v252 = vadd.s32 %v248, %v250
    %v253 = vadd.s32 %v252, %v242
    %v254 = vadd.s32 %v253, %v244
    %v255 = vand.u32 %v232, 65535
    %v256 = vshrl.u32 %v232, 16
    %v257 = vand.u32 %v227, 65535
    %v258 = vshrl.u32 %v227, 16
    %v259 = vmul.u32 %v255, %v257
    %v260 = vmul.u32 %v255, %v258
    %v261 = vmul.u32 %v256, %v257
    %v262 = vmul.u32 %v256, %v258
    %v263 = vshll.u32 %v260, 16
    %v264 = vshrl.u32 %v260, 16
    %v265 = vshll.u32 %v261, 16
    %v266 = vshrl.u32 %v261, 16
    %vm267 = vc.u32 %v259, %v263
    %v268 = vsel %vm267, 1, 0
    %v269 = vadd.s32 %v259, %v263
    %v270 = vadd.s32 %v262, %v268
    %vm271 = vc.u32 %v269, %v265
    %v272 = vsel %vm271, 1, 0
    %v273 = vadd.s32 %v269, %v265
    %v274 = vadd.s32 %v270, %v272
    %v275 = vadd.s32 %v274, %v264
    %v276 = vadd.s32 %v275, %v266
    %v277 = vmul.u32 %v232, %v223
    %v278 = vadd.s32 %v254, %v273
    %vm279 = vc.u32 %v254, %v273
    %v280 = vadd.s32 %v276, 1
    %v281 = vsel %vm279, %v280, %v276
    %v282 = vadd.s32 %v277, %v281
    %v283 = vadd.s32 %v282, 536870912
    %v284 = vshrl.u32 %v283, 30
    %v285 = vshll.u32 %v284, 30
    %v286 = vsub.s32 %v282, %v285
    %vm287 = vcmp.lt.s32.totalorder %v286, 0
    %v288 = vsub.s32 0, %v286
    %v289 = vsel %vm287, %v288, %v286
    %v290 = vclz %v289
    %v291 = vsub.s32 %v290, 2
    %vm292 = vcmp.gt.s32.totalorder 0, %v291
    %v293 = vsel %vm292, 0, %v291
    %v294 = vsub.s32 32, %v293
    %v295 = vshll.u32 %v286, %v293
    %v296 = vshrl.u32 %v278, %v294
    %v297 = vor.u32 %v295, %v296
    %v298 = vsub.s32 4294967266, %v293
    %v299 = vadd.s32 %v298, 127
    %v300 = vshll.u32 %v299, 23
    %v301 = vor.u32 4788187, %v300
    %v302 = vand.u32 2147483647, %v301
    %v304 = vcvt.s32.f32 %v297
    %v305 = vmul.f32 %v304, %v302
    %v306 = vxor.u32 %v305, 2147483648
    %v307 = vsel %vm186, %v306, %v305
    %v308 = vsub.s32 4, %v284
    %v309 = vsel %vm186, %v308, %v284
    %v310 = vsel %vm185, %v26, %v307
    %v311 = vsel %vm185, 0, %v309
    %v312 = vmul.f32 %v310, %v310
    %v313 = vmul.f32 %v312, -0.001358992
    %v314 = vadd.f32 %v313, 0.041655596
    %v315 = vmul.f32 %v312, %v314
    %v316 = vadd.f32 %v315, -0.4999988
    %v317 = vmul.f32 %v312, %v316
    %v318 = vadd.f32 1.0, %v317
    %v319 = vmul.f32 %v310, %v310
    %v320 = vmul.f32 %v319, -0.00019511016
    %v321 = vadd.f32 %v320, 0.008332121
    %v322 = vmul.f32 %v319, %v321
    %v323 = vadd.f32 %v322, -0.16666654
    %v324 = vmul.f32 %v319, %v323
    %v325 = vadd.f32 %v324, 1.0
    %v326 = vmul.f32 %v325, %v310
    %vm327 = vweird.f32 %v26
    %v328 = vadd.s32 %v311, 3
    %v329 = vand.u32 %v328, 3
    %vm330 = vcmp.lt.s32.totalorder %v329, 2
    %vm331 = vcmp.eq.s32.totalorder %v329, 0
    %v332 = vxor.u32 %v326, 2147483648
    %v333 = vsel %vm331, %v318, %v332
    %vm334 = vcmp.eq.s32.totalorder %v329, 2
    %v335 = vxor.u32 %v318, 2147483648
    %v336 = vsel %vm334, %v335, %v326
    %v337 = vsel %vm330, %v333, %v336
    %v338 = vsel %vm327, nan, %v337
    %v339 = vand.u32 2147483647, %v25
    %vm340 = vcmp.le.f32.partialorder %v339, 0.7853982
    %vm341 = vcmp.lt.s32.totalorder %v25, 0
    %v342 = vand.u32 %v25, 2139095040
    %v343 = vshrl.u32 %v342, 23
    %v344 = vsub.s32 %v343, 127
    %v345 = vand.u32 2147483647, %v25
    %v346 = vand.u32 %v345, 8388607
    %v347 = vor.u32 %v346, 8388608
    %v348 = vsub.s32 0, %v347
    %v349 = vadd.s32 %v344, 1
    %vm350 = vcmp.gt.s32.totalorder %v349, 0
    %v351 = vsel %vm350, %v349, 0
    %v352 = vshrl.u32 %v351, 5
    %v353 = vand.u32 %v351, 31
    %v354 = vsub.s32 32, %v353
    %v355 = vshrl.u32 683565275, %v354
    %v356 = vshll.u32 683565275, %v353
    %v357 = vshrl.u32 2475754826, %v354
    %v358 = vor.u32 %v356, %v357
    %v359 = vshll.u32 2475754826, %v353
    %v360 = vshrl.u32 2131351028, %v354
    %v361 = vor.u32 %v359, %v360
    %v362 = vshll.u32 2131351028, %v353
    %v363 = vshrl.u32 2102212464, %v354
    %v364 = vor.u32 %v362, %v363
    %v365 = vshll.u32 2102212464, %v353
    %v366 = vshrl.u32 920167782, %v354
    %v367 = vor.u32 %v365, %v366
    %v368 = vshll.u32 920167782, %v353
    %v369 = vshrl.u32 1326507024, %v354
    %v370 = vor.u32 %v368, %v369
    %vm371 = vcmp.lt.s32.totalorder %v352, 1
    %vm372 = vcmp.lt.s32.totalorder %v352, 2
    %vm373 = vcmp.lt.s32.totalorder %v352, 3
    %vm374 = vcmp.lt.s32.totalorder %v352, 4
    %v375 = vsel %vm371, %v355, %v358
    %v376 = vsel %vm374, %v364, 2102212464
    %v377 = vsel %vm373, %v361, %v376
    %v378 = vsel %vm372, %v375, %v377
    %v379 = vsel %vm371, %v358, %v361
    %v380 = vsel %vm374, %v367, 920167782
    %v381 = vsel %vm373, %v364, %v380
    %v382 = vsel %vm372, %v379, %v381
    %v383 = vsel %vm371, %v361, %v364
    %v384 = vsel %vm374, %v370, 1326507024
    %v385 = vsel %vm373, %v367, %v384
    %v386 = vsel %vm372, %v383, %v385
    %v387 = vshll.u32 %v347, 8
    %v388 = vand.u32 %v387, 65535
    %v389 = vshrl.u32 %v387, 16
    %v390 = vand.u32 %v386, 65535
    %v391 = vshrl.u32 %v386, 16
    %v392 = vmul.u32 %v388, %v390
    %v393 = vmul.u32 %v388, %v391
    %v394 = vmul.u32 %v389, %v390
    %v395 = vmul.u32 %v389, %v391
    %v396 = vshll.u32 %v393, 16
    %v397 = vshrl.u32 %v393, 16
    %v398 = vshll.u32 %v394, 16
    %v399 = vshrl.u32 %v394, 16
    %vm400 = vc.u32 %v392, %v396
    %v401 = vsel %vm400, 1, 0
    %v402 = vadd.s32 %v392, %v396
    %v403 = vadd.s32 %v395, %v401
    %vm404 = vc.u32 %v402, %v398
    %v405 = vsel %vm404, 1, 0
    %v406 = vadd.s32 %v402, %v398
    %v407 = vadd.s32 %v403, %v405
    %v408 = vadd.s32 %v407, %v397
    %v409 = vadd.s32 %v408, %v399
    %v410 = vand.u32 %v387, 65535
    %v411 = vshrl.u32 %v387, 16
    %v412 = vand.u32 %v382, 65535
    %v413 = vshrl.u32 %v382, 16
    %v414 = vmul.u32 %v410, %v412
    %v415 = vmul.u32 %v410, %v413
    %v416 = vmul.u32 %v411, %v412
    %v417 = vmul.u32 %v411, %v413
    %v418 = vshll.u32 %v415, 16
    %v419 = vshrl.u32 %v415, 16
    %v420 = vshll.u32 %v416, 16
    %v421 = vshrl.u32 %v416, 16
    %vm422 = vc.u32 %v414, %v418
    %v423 = vsel %vm422, 1, 0
    %v424 = vadd.s32 %v414, %v418
    %v425 = vadd.s32 %v417, %v423
    %vm426 = vc.u32 %v424, %v420
    %v427 = vsel %vm426, 1, 0
    %v428 = vadd.s32 %v424, %v420
    %v429 = vadd.s32 %v425, %v427
    %v430 = vadd.s32 %v429, %v419
    %v431 = vadd.s32 %v430, %v421
    %v432 = vmul.u32 %v387, %v378
    %v433 = vadd.s32 %v409, %v428
    %vm434 = vc.u32 %v409, %v428
    %v435 = vadd.s32 %v431, 1
    %v436 = vsel %vm434, %v435, %v431
    %v437 = vadd.s32 %v432, %v436
    %v438 = vadd.s32 %v437, 536870912
    %v439 = vshrl.u32 %v438, 30
    %v440 = vshll.u32 %v439, 30
    %v441 = vsub.s32 %v437, %v440
    %vm442 = vcmp.lt.s32.totalorder %v441, 0
    %v443 = vsub.s32 0, %v441
    %v444 = vsel %vm442, %v443, %v441
    %v445 = vclz %v444
    %v446 = vsub.s32 %v445, 2
    %vm447 = vcmp.gt.s32.totalorder 0, %v446
    %v448 = vsel %vm447, 0, %v446
    %v449 = vsub.s32 32, %v448
    %v450 = vshll.u32 %v441, %v448
    %v451 = vshrl.u32 %v433, %v449
    %v452 = vor.u32 %v450, %v451
    %v453 = vsub.s32 4294967266, %v448
    %v454 = vadd.s32 %v453, 127
    %v455 = vshll.u32 %v454, 23
    %v456 = vor.u32 4788187, %v455
    %v457 = vand.u32 2147483647, %v456
    %v459 = vcvt.s32.f32 %v452
    %v460 = vmul.f32 %v459, %v457
    %v461 = vxor.u32 %v460, 2147483648
    %v462 = vsel %vm341, %v461, %v460
    %v463 = vsub.s32 4, %v439
    %v464 = vsel %vm341, %v463, %v439
    %v465 = vsel %vm340, %v25, %v462
    %v466 = vsel %vm340, 0, %v464
    %v467 = vmul.f32 %v465, %v465
    %v468 = vmul.f32 %v467, -0.001358992
    %v469 = vadd.f32 %v468, 0.041655596
    %v470 = vmul.f32 %v467, %v469
    %v471 = vadd.f32 %v470, -0.4999988
    %v472 = vmul.f32 %v467, %v471
    %v473 = vadd.f32 1.0, %v472
    %v474 = vmul.f32 %v465, %v465
    %v475 = vmul.f32 %v474, -0.00019511016
    %v476 = vadd.f32 %v475, 0.008332121
    %v477 = vmul.f32 %v474, %v476
    %v478 = vadd.f32 %v477, -0.16666654
    %v479 = vmul.f32 %v474, %v478
    %v480 = vadd.f32 %v479, 1.0
    %v481 = vmul.f32 %v480, %v465
    %vm482 = vweird.f32 %v25
    %v483 = vand.u32 %v466, 3
    %vm484 = vcmp.lt.s32.totalorder %v483, 2
    %vm485 = vcmp.eq.s32.totalorder %v483, 0
    %v486 = vxor.u32 %v481, 2147483648
    %v487 = vsel %vm485, %v473, %v486
    %vm488 = vcmp.eq.s32.totalorder %v483, 2
    %v489 = vxor.u32 %v473, 2147483648
    %v490 = vsel %vm488, %v489, %v481
    %v491 = vsel %vm484, %v487, %v490
    %v492 = vsel %vm482, nan, %v491
    %v493 = vand.u32 2147483647, %v26
    %vm494 = vcmp.le.f32.partialorder %v493, 0.7853982
    %vm495 = vcmp.lt.s32.totalorder %v26, 0
    %v496 = vand.u32 %v26, 2139095040
    %v497 = vshrl.u32 %v496, 23
    %v498 = vsub.s32 %v497, 127
    %v499 = vand.u32 2147483647, %v26
    %v500 = vand.u32 %v499, 8388607
    %v501 = vor.u32 %v500, 8388608
    %v502 = vsub.s32 0, %v501
    %v503 = vadd.s32 %v498, 1
    %vm504 = vcmp.gt.s32.totalorder %v503, 0
    %v505 = vsel %vm504, %v503, 0
    %v506 = vshrl.u32 %v505, 5
    %v507 = vand.u32 %v505, 31
    %v508 = vsub.s32 32, %v507
    %v509 = vshrl.u32 683565275, %v508
    %v510 = vshll.u32 683565275, %v507
    %v511 = vshrl.u32 2475754826, %v508
    %v512 = vor.u32 %v510, %v511
    %v513 = vshll.u32 2475754826, %v507
    %v514 = vshrl.u32 2131351028, %v508
    %v515 = vor.u32 %v513, %v514
    %v516 = vshll.u32 2131351028, %v507
    %v517 = vshrl.u32 2102212464, %v508
    %v518 = vor.u32 %v516, %v517
    %v519 = vshll.u32 2102212464, %v507
    %v520 = vshrl.u32 920167782, %v508
    %v521 = vor.u32 %v519, %v520
    %v522 = vshll.u32 920167782, %v507
    %v523 = vshrl.u32 1326507024, %v508
    %v524 = vor.u32 %v522, %v523
    %vm525 = vcmp.lt.s32.totalorder %v506, 1
    %vm526 = vcmp.lt.s32.totalorder %v506, 2
    %vm527 = vcmp.lt.s32.totalorder %v506, 3
    %vm528 = vcmp.lt.s32.totalorder %v506, 4
    %v529 = vsel %vm525, %v509, %v512
    %v530 = vsel %vm528, %v518, 2102212464
    %v531 = vsel %vm527, %v515, %v530
    %v532 = vsel %vm526, %v529, %v531
    %v533 = vsel %vm525, %v512, %v515
    %v534 = vsel %vm528, %v521, 920167782
    %v535 = vsel %vm527, %v518, %v534
    %v536 = vsel %vm526, %v533, %v535
    %v537 = vsel %vm525, %v515, %v518
    %v538 = vsel %vm528, %v524, 1326507024
    %v539 = vsel %vm527, %v521, %v538
    %v540 = vsel %vm526, %v537, %v539
    %v541 = vshll.u32 %v501, 8
    %v542 = vand.u32 %v541, 65535
    %v543 = vshrl.u32 %v541, 16
    %v544 = vand.u32 %v540, 65535
    %v545 = vshrl.u32 %v540, 16
    %v546 = vmul.u32 %v542, %v544
    %v547 = vmul.u32 %v542, %v545
    %v548 = vmul.u32 %v543, %v544
    %v549 = vmul.u32 %v543, %v545
    %v550 = vshll.u32 %v547, 16
    %v551 = vshrl.u32 %v547, 16
    %v552 = vshll.u32 %v548, 16
    %v553 = vshrl.u32 %v548, 16
    %vm554 = vc.u32 %v546, %v550
    %v555 = vsel %vm554, 1, 0
    %v556 = vadd.s32 %v546, %v550
    %v557 = vadd.s32 %v549, %v555
    %vm558 = vc.u32 %v556, %v552
    %v559 = vsel %vm558, 1, 0
    %v560 = vadd.s32 %v556, %v552
    %v561 = vadd.s32 %v557, %v559
    %v562 = vadd.s32 %v561, %v551
    %v563 = vadd.s32 %v562, %v553
    %v564 = vand.u32 %v541, 65535
    %v565 = vshrl.u32 %v541, 16
    %v566 = vand.u32 %v536, 65535
    %v567 = vshrl.u32 %v536, 16
    %v568 = vmul.u32 %v564, %v566
    %v569 = vmul.u32 %v564, %v567
    %v570 = vmul.u32 %v565, %v566
    %v571 = vmul.u32 %v565, %v567
    %v572 = vshll.u32 %v569, 16
    %v573 = vshrl.u32 %v569, 16
    %v574 = vshll.u32 %v570, 16
    %v575 = vshrl.u32 %v570, 16
    %vm576 = vc.u32 %v568, %v572
    %v577 = vsel %vm576, 1, 0
    %v578 = vadd.s32 %v568, %v572
    %v579 = vadd.s32 %v571, %v577
    %vm580 = vc.u32 %v578, %v574
    %v581 = vsel %vm580, 1, 0
    %v582 = vadd.s32 %v578, %v574
    %v583 = vadd.s32 %v579, %v581
    %v584 = vadd.s32 %v583, %v573
    %v585 = vadd.s32 %v584, %v575
    %v586 = vmul.u32 %v541, %v532
    %v587 = vadd.s32 %v563, %v582
    %vm588 = vc.u32 %v563, %v582
    %v589 = vadd.s32 %v585, 1
    %v590 = vsel %vm588, %v589, %v585
    %v591 = vadd.s32 %v586, %v590
    %v592 = vadd.s32 %v591, 536870912
    %v593 = vshrl.u32 %v592, 30
    %v594 = vshll.u32 %v593, 30
    %v595 = vsub.s32 %v591, %v594
    %vm596 = vcmp.lt.s32.totalorder %v595, 0
    %v597 = vsub.s32 0, %v595
    %v598 = vsel %vm596, %v597, %v595
    %v599 = vclz %v598
    %v600 = vsub.s32 %v599, 2
    %vm601 = vcmp.gt.s32.totalorder 0, %v600
    %v602 = vsel %vm601, 0, %v600
    %v603 = vsub.s32 32, %v602
    %v604 = vshll.u32 %v595, %v602
    %v605 = vshrl.u32 %v587, %v603
    %v606 = vor.u32 %v604, %v605
    %v607 = vsub.s32 4294967266, %v602
    %v608 = vadd.s32 %v607, 127
    %v609 = vshll.u32 %v608, 23
    %v610 = vor.u32 4788187, %v609
    %v611 = vand.u32 2147483647, %v610
    %v613 = vcvt.s32.f32 %v606
    %v614 = vmul.f32 %v613, %v611
    %v615 = vxor.u32 %v614, 2147483648
    %v616 = vsel %vm495, %v615, %v614
    %v617 = vsub.s32 4, %v593
    %v618 = vsel %vm495, %v617, %v593
    %v619 = vsel %vm494, %v26, %v616
    %v620 = vsel %vm494, 0, %v618
    %v621 = vmul.f32 %v619, %v619
    %v622 = vmul.f32 %v621, -0.001358992
    %v623 = vadd.f32 %v622, 0.041655596
    %v624 = vmul.f32 %v621, %v623
    %v625 = vadd.f32 %v624, -0.4999988
    %v626 = vmul.f32 %v621, %v625
    %v627 = vadd.f32 1.0, %v626
    %v628 = vmul.f32 %v619, %v619
    %v629 = vmul.f32 %v628, -0.00019511016
    %v630 = vadd.f32 %v629, 0.008332121
    %v631 = vmul.f32 %v628, %v630
    %v632 = vadd.f32 %v631, -0.16666654
    %v633 = vmul.f32 %v628, %v632
    %v634 = vadd.f32 %v633, 1.0
    %v635 = vmul.f32 %v634, %v619
    %vm636 = vweird.f32 %v26
    %v637 = vand.u32 %v620, 3
    %vm638 = vcmp.lt.s32.totalorder %v637, 2
    %vm639 = vcmp.eq.s32.totalorder %v637, 0
    %v640 = vxor.u32 %v635, 2147483648
    %v641 = vsel %vm639, %v627, %v640
    %vm642 = vcmp.eq.s32.totalorder %v637, 2
    %v643 = vxor.u32 %v627, 2147483648
    %v644 = vsel %vm642, %v643, %v635
    %v645 = vsel %vm638, %v641, %v644
    %v646 = vsel %vm636, nan, %v645
    %s647 = scalar_lea.vmem [#allocation5], 16
    %648 = vst [vmem:[%s647] sm:$0xff] %v183
    %649 = vst [vmem:[%s647 + $0x8] sm:$0xff] %v338
    %s650 = scalar_lea.vmem [#allocation5], 32
    %651 = vst [vmem:[%s650] sm:$0xff] %v492
    %652 = vst [vmem:[%s650 + $0x8] sm:$0xff] %v646
    %v653 = vmul.f32 %v183, 2.0
    %v654 = vmul.f32 %v338, 2.0
    %v655 = vmul.f32 %v653, %v492
    %v656 = vmul.f32 %v654, %v646
    %v657 = vmul.f32 %v653, %v183
    %v658 = vmul.f32 %v654, %v338
    %v659 = vsub.f32 1.0, %v657
    %v660 = vsub.f32 1.0, %v658
    %s661 = scalar_lea.vmem [#allocation5], 48
    %662 = vst [vmem:[%s661] sm:$0xff] %v655
    %663 = vst [vmem:[%s661 + $0x8] sm:$0xff] %v656
    %s664 = scalar_lea.vmem [#allocation5], 64
    %665 = vst [vmem:[%s664] sm:$0xff] %v659
    %666 = vst [vmem:[%s664 + $0x8] sm:$0xff] %v660
    %v667 = vmul.f32 %v655, 2.0
    %v668 = vmul.f32 %v656, 2.0
    %v669 = vmul.f32 %v667, %v659
    %v670 = vmul.f32 %v668, %v660
    %v671 = vmul.f32 %v667, %v655
    %v672 = vmul.f32 %v668, %v656
    %v673 = vsub.f32 1.0, %v671
    %v674 = vsub.f32 1.0, %v672
    %s675 = scalar_lea.vmem [#allocation5], 80
    %676 = vst [vmem:[%s675] sm:$0xff] %v669
    %677 = vst [vmem:[%s675 + $0x8] sm:$0xff] %v670
    %s678 = scalar_lea.vmem [#allocation5], 96
    %679 = vst [vmem:[%s678] sm:$0xff] %v673
    %680 = vst [vmem:[%s678 + $0x8] sm:$0xff] %v674
    %v681 = vmul.f32 %v25, 8.0
    %v682 = vmul.f32 %v26, 8.0
    %v683 = vand.u32 2147483647, %v681
    %vm684 = vcmp.le.f32.partialorder %v683, 0.7853982
    %vm685 = vcmp.lt.s32.totalorder %v681, 0
    %v686 = vand.u32 %v681, 2139095040
    %v687 = vshrl.u32 %v686, 23
    %v688 = vsub.s32 %v687, 127
    %v689 = vand.u32 2147483647, %v681
    %v690 = vand.u32 %v689, 8388607
    %v691 = vor.u32 %v690, 8388608
    %v692 = vsub.s32 0, %v691
    %v693 = vadd.s32 %v688, 1
    %vm694 = vcmp.gt.s32.totalorder %v693, 0
    %v695 = vsel %vm694, %v693, 0
    %v696 = vshrl.u32 %v695, 5
    %v697 = vand.u32 %v695, 31
    %v698 = vsub.s32 32, %v697
    %v699 = vshrl.u32 683565275, %v698
    %v700 = vshll.u32 683565275, %v697
    %v701 = vshrl.u32 2475754826, %v698
    %v702 = vor.u32 %v700, %v701
    %v703 = vshll.u32 2475754826, %v697
    %v704 = vshrl.u32 2131351028, %v698
    %v705 = vor.u32 %v703, %v704
    %v706 = vshll.u32 2131351028, %v697
    %v707 = vshrl.u32 2102212464, %v698
    %v708 = vor.u32 %v706, %v707
    %v709 = vshll.u32 2102212464, %v697
    %v710 = vshrl.u32 920167782, %v698
    %v711 = vor.u32 %v709, %v710
    %v712 = vshll.u32 920167782, %v697
    %v713 = vshrl.u32 1326507024, %v698
    %v714 = vor.u32 %v712, %v713
    %vm715 = vcmp.lt.s32.totalorder %v696, 1
    %vm716 = vcmp.lt.s32.totalorder %v696, 2
    %vm717 = vcmp.lt.s32.totalorder %v696, 3
    %vm718 = vcmp.lt.s32.totalorder %v696, 4
    %v719 = vsel %vm715, %v699, %v702
    %v720 = vsel %vm718, %v708, 2102212464
    %v721 = vsel %vm717, %v705, %v720
    %v722 = vsel %vm716, %v719, %v721
    %v723 = vsel %vm715, %v702, %v705
    %v724 = vsel %vm718, %v711, 920167782
    %v725 = vsel %vm717, %v708, %v724
    %v726 = vsel %vm716, %v723, %v725
    %v727 = vsel %vm715, %v705, %v708
    %v728 = vsel %vm718, %v714, 1326507024
    %v729 = vsel %vm717, %v711, %v728
    %v730 = vsel %vm716, %v727, %v729
    %v731 = vshll.u32 %v691, 8
    %v732 = vand.u32 %v731, 65535
    %v733 = vshrl.u32 %v731, 16
    %v734 = vand.u32 %v730, 65535
    %v735 = vshrl.u32 %v730, 16
    %v736 = vmul.u32 %v732, %v734
    %v737 = vmul.u32 %v732, %v735
    %v738 = vmul.u32 %v733, %v734
    %v739 = vmul.u32 %v733, %v735
    %v740 = vshll.u32 %v737, 16
    %v741 = vshrl.u32 %v737, 16
    %v742 = vshll.u32 %v738, 16
    %v743 = vshrl.u32 %v738, 16
    %vm744 = vc.u32 %v736, %v740
    %v745 = vsel %vm744, 1, 0
    %v746 = vadd.s32 %v736, %v740
    %v747 = vadd.s32 %v739, %v745
    %vm748 = vc.u32 %v746, %v742
    %v749 = vsel %vm748, 1, 0
    %v750 = vadd.s32 %v746, %v742
    %v751 = vadd.s32 %v747, %v749
    %v752 = vadd.s32 %v751, %v741
    %v753 = vadd.s32 %v752, %v743
    %v754 = vand.u32 %v731, 65535
    %v755 = vshrl.u32 %v731, 16
    %v756 = vand.u32 %v726, 65535
    %v757 = vshrl.u32 %v726, 16
    %v758 = vmul.u32 %v754, %v756
    %v759 = vmul.u32 %v754, %v757
    %v760 = vmul.u32 %v755, %v756
    %v761 = vmul.u32 %v755, %v757
    %v762 = vshll.u32 %v759, 16
    %v763 = vshrl.u32 %v759, 16
    %v764 = vshll.u32 %v760, 16
    %v765 = vshrl.u32 %v760, 16
    %vm766 = vc.u32 %v758, %v762
    %v767 = vsel %vm766, 1, 0
    %v768 = vadd.s32 %v758, %v762
    %v769 = vadd.s32 %v761, %v767
    %vm770 = vc.u32 %v768, %v764
    %v771 = vsel %vm770, 1, 0
    %v772 = vadd.s32 %v768, %v764
    %v773 = vadd.s32 %v769, %v771
    %v774 = vadd.s32 %v773, %v763
    %v775 = vadd.s32 %v774, %v765
    %v776 = vmul.u32 %v731, %v722
    %v777 = vadd.s32 %v753, %v772
    %vm778 = vc.u32 %v753, %v772
    %v779 = vadd.s32 %v775, 1
    %v780 = vsel %vm778, %v779, %v775
    %v781 = vadd.s32 %v776, %v780
    %v782 = vadd.s32 %v781, 536870912
    %v783 = vshrl.u32 %v782, 30
    %v784 = vshll.u32 %v783, 30
    %v785 = vsub.s32 %v781, %v784
    %vm786 = vcmp.lt.s32.totalorder %v785, 0
    %v787 = vsub.s32 0, %v785
    %v788 = vsel %vm786, %v787, %v785
    %v789 = vclz %v788
    %v790 = vsub.s32 %v789, 2
    %vm791 = vcmp.gt.s32.totalorder 0, %v790
    %v792 = vsel %vm791, 0, %v790
    %v793 = vsub.s32 32, %v792
    %v794 = vshll.u32 %v785, %v792
    %v795 = vshrl.u32 %v777, %v793
    %v796 = vor.u32 %v794, %v795
    %v797 = vsub.s32 4294967266, %v792
    %v798 = vadd.s32 %v797, 127
    %v799 = vshll.u32 %v798, 23
    %v800 = vor.u32 4788187, %v799
    %v801 = vand.u32 2147483647, %v800
    %v803 = vcvt.s32.f32 %v796
    %v804 = vmul.f32 %v803, %v801
    %v805 = vxor.u32 %v804, 2147483648
    %v806 = vsel %vm685, %v805, %v804
    %v807 = vsub.s32 4, %v783
    %v808 = vsel %vm685, %v807, %v783
    %v809 = vsel %vm684, %v681, %v806
    %v810 = vsel %vm684, 0, %v808
    %v811 = vmul.f32 %v809, %v809
    %v812 = vmul.f32 %v811, -0.001358992
    %v813 = vadd.f32 %v812, 0.041655596
    %v814 = vmul.f32 %v811, %v813
    %v815 = vadd.f32 %v814, -0.4999988
    %v816 = vmul.f32 %v811, %v815
    %v817 = vadd.f32 1.0, %v816
    %v818 = vmul.f32 %v809, %v809
    %v819 = vmul.f32 %v818, -0.00019511016
    %v820 = vadd.f32 %v819, 0.008332121
    %v821 = vmul.f32 %v818, %v820
    %v822 = vadd.f32 %v821, -0.16666654
    %v823 = vmul.f32 %v818, %v822
    %v824 = vadd.f32 %v823, 1.0
    %v825 = vmul.f32 %v824, %v809
    %vm826 = vweird.f32 %v681
    %v827 = vadd.s32 %v810, 3
    %v828 = vand.u32 %v827, 3
    %vm829 = vcmp.lt.s32.totalorder %v828, 2
    %vm830 = vcmp.eq.s32.totalorder %v828, 0
    %v831 = vxor.u32 %v825, 2147483648
    %v832 = vsel %vm830, %v817, %v831
    %vm833 = vcmp.eq.s32.totalorder %v828, 2
    %v834 = vxor.u32 %v817, 2147483648
    %v835 = vsel %vm833, %v834, %v825
    %v836 = vsel %vm829, %v832, %v835
    %v837 = vsel %vm826, nan, %v836
    %v838 = vand.u32 2147483647, %v682
    %vm839 = vcmp.le.f32.partialorder %v838, 0.7853982
    %vm840 = vcmp.lt.s32.totalorder %v682, 0
    %v841 = vand.u32 %v682, 2139095040
    %v842 = vshrl.u32 %v841, 23
    %v843 = vsub.s32 %v842, 127
    %v844 = vand.u32 2147483647, %v682
    %v845 = vand.u32 %v844, 8388607
    %v846 = vor.u32 %v845, 8388608
    %v847 = vsub.s32 0, %v846
    %v848 = vadd.s32 %v843, 1
    %vm849 = vcmp.gt.s32.totalorder %v848, 0
    %v850 = vsel %vm849, %v848, 0
    %v851 = vshrl.u32 %v850, 5
    %v852 = vand.u32 %v850, 31
    %v853 = vsub.s32 32, %v852
    %v854 = vshrl.u32 683565275, %v853
    %v855 = vshll.u32 683565275, %v852
    %v856 = vshrl.u32 2475754826, %v853
    %v857 = vor.u32 %v855, %v856
    %v858 = vshll.u32 2475754826, %v852
    %v859 = vshrl.u32 2131351028, %v853
    %v860 = vor.u32 %v858, %v859
    %v861 = vshll.u32 2131351028, %v852
    %v862 = vshrl.u32 2102212464, %v853
    %v863 = vor.u32 %v861, %v862
    %v864 = vshll.u32 2102212464, %v852
    %v865 = vshrl.u32 920167782, %v853
    %v866 = vor.u32 %v864, %v865
    %v867 = vshll.u32 920167782, %v852
    %v868 = vshrl.u32 1326507024, %v853
    %v869 = vor.u32 %v867, %v868
    %vm870 = vcmp.lt.s32.totalorder %v851, 1
    %vm871 = vcmp.lt.s32.totalorder %v851, 2
    %vm872 = vcmp.lt.s32.totalorder %v851, 3
    %vm873 = vcmp.lt.s32.totalorder %v851, 4
    %v874 = vsel %vm870, %v854, %v857
    %v875 = vsel %vm873, %v863, 2102212464
    %v876 = vsel %vm872, %v860, %v875
    %v877 = vsel %vm871, %v874, %v876
    %v878 = vsel %vm870, %v857, %v860
    %v879 = vsel %vm873, %v866, 920167782
    %v880 = vsel %vm872, %v863, %v879
    %v881 = vsel %vm871, %v878, %v880
    %v882 = vsel %vm870, %v860, %v863
    %v883 = vsel %vm873, %v869, 1326507024
    %v884 = vsel %vm872, %v866, %v883
    %v885 = vsel %vm871, %v882, %v884
    %v886 = vshll.u32 %v846, 8
    %v887 = vand.u32 %v886, 65535
    %v888 = vshrl.u32 %v886, 16
    %v889 = vand.u32 %v885, 65535
    %v890 = vshrl.u32 %v885, 16
    %v891 = vmul.u32 %v887, %v889
    %v892 = vmul.u32 %v887, %v890
    %v893 = vmul.u32 %v888, %v889
    %v894 = vmul.u32 %v888, %v890
    %v895 = vshll.u32 %v892, 16
    %v896 = vshrl.u32 %v892, 16
    %v897 = vshll.u32 %v893, 16
    %v898 = vshrl.u32 %v893, 16
    %vm899 = vc.u32 %v891, %v895
    %v900 = vsel %vm899, 1, 0
    %v901 = vadd.s32 %v891, %v895
    %v902 = vadd.s32 %v894, %v900
    %vm903 = vc.u32 %v901, %v897
    %v904 = vsel %vm903, 1, 0
    %v905 = vadd.s32 %v901, %v897
    %v906 = vadd.s32 %v902, %v904
    %v907 = vadd.s32 %v906, %v896
    %v908 = vadd.s32 %v907, %v898
    %v909 = vand.u32 %v886, 65535
    %v910 = vshrl.u32 %v886, 16
    %v911 = vand.u32 %v881, 65535
    %v912 = vshrl.u32 %v881, 16
    %v913 = vmul.u32 %v909, %v911
    %v914 = vmul.u32 %v909, %v912
    %v915 = vmul.u32 %v910, %v911
    %v916 = vmul.u32 %v910, %v912
    %v917 = vshll.u32 %v914, 16
    %v918 = vshrl.u32 %v914, 16
    %v919 = vshll.u32 %v915, 16
    %v920 = vshrl.u32 %v915, 16
    %vm921 = vc.u32 %v913, %v917
    %v922 = vsel %vm921, 1, 0
    %v923 = vadd.s32 %v913, %v917
    %v924 = vadd.s32 %v916, %v922
    %vm925 = vc.u32 %v923, %v919
    %v926 = vsel %vm925, 1, 0
    %v927 = vadd.s32 %v923, %v919
    %v928 = vadd.s32 %v924, %v926
    %v929 = vadd.s32 %v928, %v918
    %v930 = vadd.s32 %v929, %v920
    %v931 = vmul.u32 %v886, %v877
    %v932 = vadd.s32 %v908, %v927
    %vm933 = vc.u32 %v908, %v927
    %v934 = vadd.s32 %v930, 1
    %v935 = vsel %vm933, %v934, %v930
    %v936 = vadd.s32 %v931, %v935
    %v937 = vadd.s32 %v936, 536870912
    %v938 = vshrl.u32 %v937, 30
    %v939 = vshll.u32 %v938, 30
    %v940 = vsub.s32 %v936, %v939
    %vm941 = vcmp.lt.s32.totalorder %v940, 0
    %v942 = vsub.s32 0, %v940
    %v943 = vsel %vm941, %v942, %v940
    %v944 = vclz %v943
    %v945 = vsub.s32 %v944, 2
    %vm946 = vcmp.gt.s32.totalorder 0, %v945
    %v947 = vsel %vm946, 0, %v945
    %v948 = vsub.s32 32, %v947
    %v949 = vshll.u32 %v940, %v947
    %v950 = vshrl.u32 %v932, %v948
    %v951 = vor.u32 %v949, %v950
    %v952 = vsub.s32 4294967266, %v947
    %v953 = vadd.s32 %v952, 127
    %v954 = vshll.u32 %v953, 23
    %v955 = vor.u32 4788187, %v954
    %v956 = vand.u32 2147483647, %v955
    %v958 = vcvt.s32.f32 %v951
    %v959 = vmul.f32 %v958, %v956
    %v960 = vxor.u32 %v959, 2147483648
    %v961 = vsel %vm840, %v960, %v959
    %v962 = vsub.s32 4, %v938
    %v963 = vsel %vm840, %v962, %v938
    %v964 = vsel %vm839, %v682, %v961
    %v965 = vsel %vm839, 0, %v963
    %v966 = vmul.f32 %v964, %v964
    %v967 = vmul.f32 %v966, -0.001358992
    %v968 = vadd.f32 %v967, 0.041655596
    %v969 = vmul.f32 %v966, %v968
    %v970 = vadd.f32 %v969, -0.4999988
    %v971 = vmul.f32 %v966, %v970
    %v972 = vadd.f32 1.0, %v971
    %v973 = vmul.f32 %v964, %v964
    %v974 = vmul.f32 %v973, -0.00019511016
    %v975 = vadd.f32 %v974, 0.008332121
    %v976 = vmul.f32 %v973, %v975
    %v977 = vadd.f32 %v976, -0.16666654
    %v978 = vmul.f32 %v973, %v977
    %v979 = vadd.f32 %v978, 1.0
    %v980 = vmul.f32 %v979, %v964
    %vm981 = vweird.f32 %v682
    %v982 = vadd.s32 %v965, 3
    %v983 = vand.u32 %v982, 3
    %vm984 = vcmp.lt.s32.totalorder %v983, 2
    %vm985 = vcmp.eq.s32.totalorder %v983, 0
    %v986 = vxor.u32 %v980, 2147483648
    %v987 = vsel %vm985, %v972, %v986
    %vm988 = vcmp.eq.s32.totalorder %v983, 2
    %v989 = vxor.u32 %v972, 2147483648
    %v990 = vsel %vm988, %v989, %v980
    %v991 = vsel %vm984, %v987, %v990
    %v992 = vsel %vm981, nan, %v991
    %v993 = vand.u32 2147483647, %v681
    %vm994 = vcmp.le.f32.partialorder %v993, 0.7853982
    %vm995 = vcmp.lt.s32.totalorder %v681, 0
    %v996 = vand.u32 %v681, 2139095040
    %v997 = vshrl.u32 %v996, 23
    %v998 = vsub.s32 %v997, 127
    %v999 = vand.u32 2147483647, %v681
    %v1000 = vand.u32 %v999, 8388607
    %v1001 = vor.u32 %v1000, 8388608
    %v1002 = vsub.s32 0, %v1001
    %v1003 = vadd.s32 %v998, 1
    %vm1004 = vcmp.gt.s32.totalorder %v1003, 0
    %v1005 = vsel %vm1004, %v1003, 0
    %v1006 = vshrl.u32 %v1005, 5
    %v1007 = vand.u32 %v1005, 31
    %v1008 = vsub.s32 32, %v1007
    %v1009 = vshrl.u32 683565275, %v1008
    %v1010 = vshll.u32 683565275, %v1007
    %v1011 = vshrl.u32 2475754826, %v1008
    %v1012 = vor.u32 %v1010, %v1011
    %v1013 = vshll.u32 2475754826, %v1007
    %v1014 = vshrl.u32 2131351028, %v1008
    %v1015 = vor.u32 %v1013, %v1014
    %v1016 = vshll.u32 2131351028, %v1007
    %v1017 = vshrl.u32 2102212464, %v1008
    %v1018 = vor.u32 %v1016, %v1017
    %v1019 = vshll.u32 2102212464, %v1007
    %v1020 = vshrl.u32 920167782, %v1008
    %v1021 = vor.u32 %v1019, %v1020
    %v1022 = vshll.u32 920167782, %v1007
    %v1023 = vshrl.u32 1326507024, %v1008
    %v1024 = vor.u32 %v1022, %v1023
    %vm1025 = vcmp.lt.s32.totalorder %v1006, 1
    %vm1026 = vcmp.lt.s32.totalorder %v1006, 2
    %vm1027 = vcmp.lt.s32.totalorder %v1006, 3
    %vm1028 = vcmp.lt.s32.totalorder %v1006, 4
    %v1029 = vsel %vm1025, %v1009, %v1012
    %v1030 = vsel %vm1028, %v1018, 2102212464
    %v1031 = vsel %vm1027, %v1015, %v1030
    %v1032 = vsel %vm1026, %v1029, %v1031
    %v1033 = vsel %vm1025, %v1012, %v1015
    %v1034 = vsel %vm1028, %v1021, 920167782
    %v1035 = vsel %vm1027, %v1018, %v1034
    %v1036 = vsel %vm1026, %v1033, %v1035
    %v1037 = vsel %vm1025, %v1015, %v1018
    %v1038 = vsel %vm1028, %v1024, 1326507024
    %v1039 = vsel %vm1027, %v1021, %v1038
    %v1040 = vsel %vm1026, %v1037, %v1039
    %v1041 = vshll.u32 %v1001, 8
    %v1042 = vand.u32 %v1041, 65535
    %v1043 = vshrl.u32 %v1041, 16
    %v1044 = vand.u32 %v1040, 65535
    %v1045 = vshrl.u32 %v1040, 16
    %v1046 = vmul.u32 %v1042, %v1044
    %v1047 = vmul.u32 %v1042, %v1045
    %v1048 = vmul.u32 %v1043, %v1044
    %v1049 = vmul.u32 %v1043, %v1045
    %v1050 = vshll.u32 %v1047, 16
    %v1051 = vshrl.u32 %v1047, 16
    %v1052 = vshll.u32 %v1048, 16
    %v1053 = vshrl.u32 %v1048, 16
    %vm1054 = vc.u32 %v1046, %v1050
    %v1055 = vsel %vm1054, 1, 0
    %v1056 = vadd.s32 %v1046, %v1050
    %v1057 = vadd.s32 %v1049, %v1055
    %vm1058 = vc.u32 %v1056, %v1052
    %v1059 = vsel %vm1058, 1, 0
    %v1060 = vadd.s32 %v1056, %v1052
    %v1061 = vadd.s32 %v1057, %v1059
    %v1062 = vadd.s32 %v1061, %v1051
    %v1063 = vadd.s32 %v1062, %v1053
    %v1064 = vand.u32 %v1041, 65535
    %v1065 = vshrl.u32 %v1041, 16
    %v1066 = vand.u32 %v1036, 65535
    %v1067 = vshrl.u32 %v1036, 16
    %v1068 = vmul.u32 %v1064, %v1066
    %v1069 = vmul.u32 %v1064, %v1067
    %v1070 = vmul.u32 %v1065, %v1066
    %v1071 = vmul.u32 %v1065, %v1067
    %v1072 = vshll.u32 %v1069, 16
    %v1073 = vshrl.u32 %v1069, 16
    %v1074 = vshll.u32 %v1070, 16
    %v1075 = vshrl.u32 %v1070, 16
    %vm1076 = vc.u32 %v1068, %v1072
    %v1077 = vsel %vm1076, 1, 0
    %v1078 = vadd.s32 %v1068, %v1072
    %v1079 = vadd.s32 %v1071, %v1077
    %vm1080 = vc.u32 %v1078, %v1074
    %v1081 = vsel %vm1080, 1, 0
    %v1082 = vadd.s32 %v1078, %v1074
    %v1083 = vadd.s32 %v1079, %v1081
    %v1084 = vadd.s32 %v1083, %v1073
    %v1085 = vadd.s32 %v1084, %v1075
    %v1086 = vmul.u32 %v1041, %v1032
    %v1087 = vadd.s32 %v1063, %v1082
    %vm1088 = vc.u32 %v1063, %v1082
    %v1089 = vadd.s32 %v1085, 1
    %v1090 = vsel %vm1088, %v1089, %v1085
    %v1091 = vadd.s32 %v1086, %v1090
    %v1092 = vadd.s32 %v1091, 536870912
    %v1093 = vshrl.u32 %v1092, 30
    %v1094 = vshll.u32 %v1093, 30
    %v1095 = vsub.s32 %v1091, %v1094
    %vm1096 = vcmp.lt.s32.totalorder %v1095, 0
    %v1097 = vsub.s32 0, %v1095
    %v1098 = vsel %vm1096, %v1097, %v1095
    %v1099 = vclz %v1098
    %v1100 = vsub.s32 %v1099, 2
    %vm1101 = vcmp.gt.s32.totalorder 0, %v1100
    %v1102 = vsel %vm1101, 0, %v1100
    %v1103 = vsub.s32 32, %v1102
    %v1104 = vshll.u32 %v1095, %v1102
    %v1105 = vshrl.u32 %v1087, %v1103
    %v1106 = vor.u32 %v1104, %v1105
    %v1107 = vsub.s32 4294967266, %v1102
    %v1108 = vadd.s32 %v1107, 127
    %v1109 = vshll.u32 %v1108, 23
    %v1110 = vor.u32 4788187, %v1109
    %v1111 = vand.u32 2147483647, %v1110
    %v1113 = vcvt.s32.f32 %v1106
    %v1114 = vmul.f32 %v1113, %v1111
    %v1115 = vxor.u32 %v1114, 2147483648
    %v1116 = vsel %vm995, %v1115, %v1114
    %v1117 = vsub.s32 4, %v1093
    %v1118 = vsel %vm995, %v1117, %v1093
    %v1119 = vsel %vm994, %v681, %v1116
    %v1120 = vsel %vm994, 0, %v1118
    %v1121 = vmul.f32 %v1119, %v1119
    %v1122 = vmul.f32 %v1121, -0.001358992
    %v1123 = vadd.f32 %v1122, 0.041655596
    %v1124 = vmul.f32 %v1121, %v1123
    %v1125 = vadd.f32 %v1124, -0.4999988
    %v1126 = vmul.f32 %v1121, %v1125
    %v1127 = vadd.f32 1.0, %v1126
    %v1128 = vmul.f32 %v1119, %v1119
    %v1129 = vmul.f32 %v1128, -0.00019511016
    %v1130 = vadd.f32 %v1129, 0.008332121
    %v1131 = vmul.f32 %v1128, %v1130
    %v1132 = vadd.f32 %v1131, -0.16666654
    %v1133 = vmul.f32 %v1128, %v1132
    %v1134 = vadd.f32 %v1133, 1.0
    %v1135 = vmul.f32 %v1134, %v1119
    %vm1136 = vweird.f32 %v681
    %v1137 = vand.u32 %v1120, 3
    %vm1138 = vcmp.lt.s32.totalorder %v1137, 2
    %vm1139 = vcmp.eq.s32.totalorder %v1137, 0
    %v1140 = vxor.u32 %v1135, 2147483648
    %v1141 = vsel %vm1139, %v1127, %v1140
    %vm1142 = vcmp.eq.s32.totalorder %v1137, 2
    %v1143 = vxor.u32 %v1127, 2147483648
    %v1144 = vsel %vm1142, %v1143, %v1135
    %v1145 = vsel %vm1138, %v1141, %v1144
    %v1146 = vsel %vm1136, nan, %v1145
    %v1147 = vand.u32 2147483647, %v682
    %vm1148 = vcmp.le.f32.partialorder %v1147, 0.7853982
    %vm1149 = vcmp.lt.s32.totalorder %v682, 0
    %v1150 = vand.u32 %v682, 2139095040
    %v1151 = vshrl.u32 %v1150, 23
    %v1152 = vsub.s32 %v1151, 127
    %v1153 = vand.u32 2147483647, %v682
    %v1154 = vand.u32 %v1153, 8388607
    %v1155 = vor.u32 %v1154, 8388608
    %v1156 = vsub.s32 0, %v1155
    %v1157 = vadd.s32 %v1152, 1
    %vm1158 = vcmp.gt.s32.totalorder %v1157, 0
    %v1159 = vsel %vm1158, %v1157, 0
    %v1160 = vshrl.u32 %v1159, 5
    %v1161 = vand.u32 %v1159, 31
    %v1162 = vsub.s32 32, %v1161
    %v1163 = vshrl.u32 683565275, %v1162
    %v1164 = vshll.u32 683565275, %v1161
    %v1165 = vshrl.u32 2475754826, %v1162
    %v1166 = vor.u32 %v1164, %v1165
    %v1167 = vshll.u32 2475754826, %v1161
    %v1168 = vshrl.u32 2131351028, %v1162
    %v1169 = vor.u32 %v1167, %v1168
    %v1170 = vshll.u32 2131351028, %v1161
    %v1171 = vshrl.u32 2102212464, %v1162
    %v1172 = vor.u32 %v1170, %v1171
    %v1173 = vshll.u32 2102212464, %v1161
    %v1174 = vshrl.u32 920167782, %v1162
    %v1175 = vor.u32 %v1173, %v1174
    %v1176 = vshll.u32 920167782, %v1161
    %v1177 = vshrl.u32 1326507024, %v1162
    %v1178 = vor.u32 %v1176, %v1177
    %vm1179 = vcmp.lt.s32.totalorder %v1160, 1
    %vm1180 = vcmp.lt.s32.totalorder %v1160, 2
    %vm1181 = vcmp.lt.s32.totalorder %v1160, 3
    %vm1182 = vcmp.lt.s32.totalorder %v1160, 4
    %v1183 = vsel %vm1179, %v1163, %v1166
    %v1184 = vsel %vm1182, %v1172, 2102212464
    %v1185 = vsel %vm1181, %v1169, %v1184
    %v1186 = vsel %vm1180, %v1183, %v1185
    %v1187 = vsel %vm1179, %v1166, %v1169
    %v1188 = vsel %vm1182, %v1175, 920167782
    %v1189 = vsel %vm1181, %v1172, %v1188
    %v1190 = vsel %vm1180, %v1187, %v1189
    %v1191 = vsel %vm1179, %v1169, %v1172
    %v1192 = vsel %vm1182, %v1178, 1326507024
    %v1193 = vsel %vm1181, %v1175, %v1192
    %v1194 = vsel %vm1180, %v1191, %v1193
    %v1195 = vshll.u32 %v1155, 8
    %v1196 = vand.u32 %v1195, 65535
    %v1197 = vshrl.u32 %v1195, 16
    %v1198 = vand.u32 %v1194, 65535
    %v1199 = vshrl.u32 %v1194, 16
    %v1200 = vmul.u32 %v1196, %v1198
    %v1201 = vmul.u32 %v1196, %v1199
    %v1202 = vmul.u32 %v1197, %v1198
    %v1203 = vmul.u32 %v1197, %v1199
    %v1204 = vshll.u32 %v1201, 16
    %v1205 = vshrl.u32 %v1201, 16
    %v1206 = vshll.u32 %v1202, 16
    %v1207 = vshrl.u32 %v1202, 16
    %vm1208 = vc.u32 %v1200, %v1204
    %v1209 = vsel %vm1208, 1, 0
    %v1210 = vadd.s32 %v1200, %v1204
    %v1211 = vadd.s32 %v1203, %v1209
    %vm1212 = vc.u32 %v1210, %v1206
    %v1213 = vsel %vm1212, 1, 0
    %v1214 = vadd.s32 %v1210, %v1206
    %v1215 = vadd.s32 %v1211, %v1213
    %v1216 = vadd.s32 %v1215, %v1205
    %v1217 = vadd.s32 %v1216, %v1207
    %v1218 = vand.u32 %v1195, 65535
    %v1219 = vshrl.u32 %v1195, 16
    %v1220 = vand.u32 %v1190, 65535
    %v1221 = vshrl.u32 %v1190, 16
    %v1222 = vmul.u32 %v1218, %v1220
    %v1223 = vmul.u32 %v1218, %v1221
    %v1224 = vmul.u32 %v1219, %v1220
    %v1225 = vmul.u32 %v1219, %v1221
    %v1226 = vshll.u32 %v1223, 16
    %v1227 = vshrl.u32 %v1223, 16
    %v1228 = vshll.u32 %v1224, 16
    %v1229 = vshrl.u32 %v1224, 16
    %vm1230 = vc.u32 %v1222, %v1226
    %v1231 = vsel %vm1230, 1, 0
    %v1232 = vadd.s32 %v1222, %v1226
    %v1233 = vadd.s32 %v1225, %v1231
    %vm1234 = vc.u32 %v1232, %v1228
    %v1235 = vsel %vm1234, 1, 0
    %v1236 = vadd.s32 %v1232, %v1228
    %v1237 = vadd.s32 %v1233, %v1235
    %v1238 = vadd.s32 %v1237, %v1227
    %v1239 = vadd.s32 %v1238, %v1229
    %v1240 = vmul.u32 %v1195, %v1186
    %v1241 = vadd.s32 %v1217, %v1236
    %vm1242 = vc.u32 %v1217, %v1236
    %v1243 = vadd.s32 %v1239, 1
    %v1244 = vsel %vm1242, %v1243, %v1239
    %v1245 = vadd.s32 %v1240, %v1244
    %v1246 = vadd.s32 %v1245, 536870912
    %v1247 = vshrl.u32 %v1246, 30
    %v1248 = vshll.u32 %v1247, 30
    %v1249 = vsub.s32 %v1245, %v1248
    %vm1250 = vcmp.lt.s32.totalorder %v1249, 0
    %v1251 = vsub.s32 0, %v1249
    %v1252 = vsel %vm1250, %v1251, %v1249
    %v1253 = vclz %v1252
    %v1254 = vsub.s32 %v1253, 2
    %vm1255 = vcmp.gt.s32.totalorder 0, %v1254
    %v1256 = vsel %vm1255, 0, %v1254
    %v1257 = vsub.s32 32, %v1256
    %v1258 = vshll.u32 %v1249, %v1256
    %v1259 = vshrl.u32 %v1241, %v1257
    %v1260 = vor.u32 %v1258, %v1259
    %v1261 = vsub.s32 4294967266, %v1256
    %v1262 = vadd.s32 %v1261, 127
    %v1263 = vshll.u32 %v1262, 23
    %v1264 = vor.u32 4788187, %v1263
    %v1265 = vand.u32 2147483647, %v1264
    %v1267 = vcvt.s32.f32 %v1260
    %v1268 = vmul.f32 %v1267, %v1265
    %v1269 = vxor.u32 %v1268, 2147483648
    %v1270 = vsel %vm1149, %v1269, %v1268
    %v1271 = vsub.s32 4, %v1247
    %v1272 = vsel %vm1149, %v1271, %v1247
    %v1273 = vsel %vm1148, %v682, %v1270
    %v1274 = vsel %vm1148, 0, %v1272
    %v1275 = vmul.f32 %v1273, %v1273
    %v1276 = vmul.f32 %v1275, -0.001358992
    %v1277 = vadd.f32 %v1276, 0.041655596
    %v1278 = vmul.f32 %v1275, %v1277
    %v1279 = vadd.f32 %v1278, -0.4999988
    %v1280 = vmul.f32 %v1275, %v1279
    %v1281 = vadd.f32 1.0, %v1280
    %v1282 = vmul.f32 %v1273, %v1273
    %v1283 = vmul.f32 %v1282, -0.00019511016
    %v1284 = vadd.f32 %v1283, 0.008332121
    %v1285 = vmul.f32 %v1282, %v1284
    %v1286 = vadd.f32 %v1285, -0.16666654
    %v1287 = vmul.f32 %v1282, %v1286
    %v1288 = vadd.f32 %v1287, 1.0
    %v1289 = vmul.f32 %v1288, %v1273
    %vm1290 = vweird.f32 %v682
    %v1291 = vand.u32 %v1274, 3
    %vm1292 = vcmp.lt.s32.totalorder %v1291, 2
    %vm1293 = vcmp.eq.s32.totalorder %v1291, 0
    %v1294 = vxor.u32 %v1289, 2147483648
    %v1295 = vsel %vm1293, %v1281, %v1294
    %vm1296 = vcmp.eq.s32.totalorder %v1291, 2
    %v1297 = vxor.u32 %v1281, 2147483648
    %v1298 = vsel %vm1296, %v1297, %v1289
    %v1299 = vsel %vm1292, %v1295, %v1298
    %v1300 = vsel %vm1290, nan, %v1299
    %s1301 = scalar_lea.vmem [#allocation5], 112
    %1302 = vst [vmem:[%s1301] sm:$0xff] %v837
    %1303 = vst [vmem:[%s1301 + $0x8] sm:$0xff] %v992
    %s1304 = scalar_lea.vmem [#allocation5], 128
    %1305 = vst [vmem:[%s1304] sm:$0xff] %v1146
    %1306 = vst [vmem:[%s1304 + $0x8] sm:$0xff] %v1300
    %v1307 = vmul.f32 %v837, 2.0
    %v1308 = vmul.f32 %v992, 2.0
    %v1309 = vmul.f32 %v1307, %v1146
    %v1310 = vmul.f32 %v1308, %v1300
    %v1311 = vmul.f32 %v1307, %v837
    %v1312 = vmul.f32 %v1308, %v992
    %v1313 = vsub.f32 1.0, %v1311
    %v1314 = vsub.f32 1.0, %v1312
    %s1315 = scalar_lea.vmem [#allocation5], 144
    %1316 = vst [vmem:[%s1315] sm:$0xff] %v1309
    %1317 = vst [vmem:[%s1315 + $0x8] sm:$0xff] %v1310
    %s1318 = scalar_lea.vmem [#allocation5], 160
    %1319 = vst [vmem:[%s1318] sm:$0xff] %v1313
    %1320 = vst [vmem:[%s1318 + $0x8] sm:$0xff] %v1314
    %v1321 = vmul.f32 %v1309, 2.0
    %v1322 = vmul.f32 %v1310, 2.0
    %v1323 = vmul.f32 %v1321, %v1313
    %v1324 = vmul.f32 %v1322, %v1314
    %v1325 = vmul.f32 %v1321, %v1309
    %v1326 = vmul.f32 %v1322, %v1310
    %v1327 = vsub.f32 1.0, %v1325
    %v1328 = vsub.f32 1.0, %v1326
    %s1329 = scalar_lea.vmem [#allocation5], 176
    %1330 = vst [vmem:[%s1329] sm:$0xff] %v1323
    %1331 = vst [vmem:[%s1329 + $0x8] sm:$0xff] %v1324
    %s1332 = scalar_lea.vmem [#allocation5], 192
    %1333 = vst [vmem:[%s1332] sm:$0xff] %v1327
    %1334 = vst [vmem:[%s1332 + $0x8] sm:$0xff] %v1328
    // Predicated region
    $region10: #{tpu_custom_call.1} parent=1 // pred_check
      _
    $region11: #{tpu_custom_call.1} parent=1 // pred_check_branch
      %1336 = sbr.rel (0) target = $region13
    $region12: #{tpu_custom_call.1} parent=1 // pred_region
      %1338 = vsyncadd [#allocation4], 0
      %s1339 = sshll.u32 [#allocation5], 4
      %s1340 = int_to_ptr.vmem [resolvable:$true] %s1339
      %s1341 = sshll.u32 %s1, 4
      %s1342 = int_to_ptr.hbm [resolvable:$true] %s1341
      %1347 = dma.vmem_to_hbm [thread:$0]  %s1340, 3328, %s1342, [#allocation4], 128, 128, 8
    $region13: #{tpu_custom_call.1} parent=1 // pred_fallthru
      _
    // Predicated region
    $region14: #{tpu_custom_call.1} parent=1 // pred_check
      _
    $region15: #{tpu_custom_call.1} parent=1 // pred_check_branch
      %1349 = sbr.rel (0) target = $region17
    $region16: #{tpu_custom_call.1} parent=1 // pred_region
      %1351 = dma.done [#allocation4], 3328
    $region17: #{tpu_custom_call.1} parent=1 // pred_fallthru
      _
    %1352 = vsyncpa [#allocation3], 1
    %1353 = vsyncpa [#allocation4], 1

</llo_original>
